<compile_context>
chip_gen: v7x
topology: tpu7x:2x2x1
jax: 0.10.0
libtpu: 0.0.40
codegen_flags: <defaults>
</compile_context>

<pallas_src>
import functools

import jax
import jax.numpy as jnp
from jax import lax
from jax.experimental import pallas as pl
from jax.experimental.pallas import tpu as pltpu


def attention2_kernel(idx_ref, feats_ref, w_ve_ref, b_ve_ref, w_emb_ref, w_dec_ref,
                      out_ref, eg_ref, *, mxu_dtype, approx_softmax_recip):
    """One grid step = one vocab tile of the decoder.

    Steps 1-5 (encoder, gather, g, softmax, h) are tiny (B x H) and are simply recomputed per
    vocab tile: that keeps every tile independent, which is what makes the vocab grid axis
    safely "parallel" (sharded across TensorCores on v7x) without a cross-core init hazard.
    """
    B, H = eg_ref.shape
    V = w_emb_ref.shape[0]

    # 1) Embedding-row gather: E_g[j, :] = w_emb[idx[j], :].
    #    idx is scalar-prefetched (SMEM); w_emb is VMEM-resident at these shapes, so each row
    #    is a dynamic-sublane load — no DMA descriptors, no semaphore waits.
    #    Ids are clamped so a bad token id can never become an OOB access.
    for j in range(B):
        tok = jnp.clip(idx_ref[j], 0, V - 1)
        eg_ref[pl.ds(j, 1), :] = w_emb_ref[pl.ds(tok, 1), :]

    # 2) visual_encoder: Linear(visual_dim -> hidden), weight in native (out, in) layout,
    #    bf16 operands on the MXU, f32 accumulate, f32 bias add on the VPU.
    v = lax.dot_general(feats_ref[...].astype(mxu_dtype), w_ve_ref[...],
                        (((1,), (1,)), ((), ())),
                        preferred_element_type=jnp.float32)
    v = v + b_ve_ref[...]                                        # (B, H) f32

    # 3) g[i, j] = <v[i], w_emb[idx[j]]>  -> (B, B).  Tiny; kept in f32.
    g = lax.dot_general(v, eg_ref[...], (((1,), (1,)), ((), ())),
                        preferred_element_type=jnp.float32)

    # 4) Softmax over dim 0 (normalize each column across the batch axis), all f32.
    #    Exact divide by default; EUP approx reciprocal is an opt-in production fast path.
    m = jnp.max(g, axis=0, keepdims=True)
    e = jnp.exp(g - m)
    denom = jnp.sum(e, axis=0, keepdims=True)
    if approx_softmax_recip:
        att = e * pl.reciprocal(denom, approx=True)
    else:
        att = e / denom

    # 5) h = attention.T @ v  (contract axis 0 of both; no explicit transpose).  f32.
    h = lax.dot_general(att, v, (((0,), (0,)), ((), ())),
                        preferred_element_type=jnp.float32)      # (B, H)

    # 6) text_decoder tile: h @ w_dec_tile.T, bf16 operands, f32 accumulate.
    #    out_ref is a lane-dense (B, 128k) tile -> unmasked vector stores.
    out_ref[...] = lax.dot_general(h.astype(mxu_dtype), w_dec_ref[...],
                                   (((1,), (1,)), ((), ())),
                                   preferred_element_type=jnp.float32)


def attention_model2_forward(visual_input, text_input, params, *,
                             mxu_dtype=jnp.bfloat16,
                             approx_softmax_recip=False,
                             vocab_tile=128):
    """visual_input: NCHW (B, C, Hs, Ws); text_input: (B, 1) int32 token ids."""
    assert vocab_tile % 128 == 0, "vocab tile must be lane-dense (multiple of 128)"

    B = visual_input.shape[0]
    # visual_features_extractor (glue): flatten NCHW -> (B, visual_dim); the module's later
    # .squeeze(1) makes this equivalent to a plain (B, visual_dim) feature matrix.
    feats = visual_input.reshape(B, -1).astype(jnp.float32)
    idx = text_input.reshape(B).astype(jnp.int32)

    w_ve, b_ve, w_emb, w_dec = (params["w_ve"], params["b_ve"],
                                params["w_emb"], params["w_dec"])
    hidden, visual_dim = w_ve.shape
    vocab = w_emb.shape[0]

    # Pad vocab to a multiple of the lane-dense tile; decoder weight rows beyond `vocab`
    # are zero and the corresponding output columns are sliced off below.
    VT = vocab_tile
    n_tiles = pl.cdiv(vocab, VT)
    v_pad = n_tiles * VT
    w_dec_p = jnp.pad(w_dec, ((0, v_pad - vocab), (0, 0))).astype(mxu_dtype)
    w_ve_c = w_ve.astype(mxu_dtype)     # bf16 weights halve streamed HBM bytes on the MXU path

    mxu_bytes = jnp.dtype(mxu_dtype).itemsize
    cost = pl.CostEstimate(
        flops=int(2 * B * hidden * (visual_dim + 2 * B + v_pad)),
        transcendentals=int(B * B),
        bytes_accessed=int(B * 4 + feats.size * 4 + w_ve.size * mxu_bytes + hidden * 4
                           + w_emb.size * 4 + v_pad * hidden * mxu_bytes + B * v_pad * 4),
    )

    kernel = functools.partial(attention2_kernel, mxu_dtype=mxu_dtype,
                               approx_softmax_recip=approx_softmax_recip)

    grid_spec = pltpu.PrefetchScalarGridSpec(
        num_scalar_prefetch=1,                       # idx -> SMEM, available to index_maps
        grid=(n_tiles,),                             # vocab tiles; independent -> "parallel"
        in_specs=[
            pl.BlockSpec((B, visual_dim), lambda j, idx_sref: (0, 0)),      # feats (resident)
            pl.BlockSpec((hidden, visual_dim), lambda j, idx_sref: (0, 0)), # w_ve  (resident)
            pl.BlockSpec((1, hidden), lambda j, idx_sref: (0, 0)),          # b_ve  (resident)
            pl.BlockSpec((vocab, hidden), lambda j, idx_sref: (0, 0)),      # w_emb (resident, toy)
            pl.BlockSpec((VT, hidden), lambda j, idx_sref: (j, 0)),         # w_dec streamed
        ],
        out_specs=pl.BlockSpec((B, VT), lambda j, idx_sref: (0, j)),        # lane-dense out tile
        scratch_shapes=[pltpu.VMEM((B, hidden), jnp.float32)],              # gathered E_g rows
    )

    out_padded = pl.pallas_call(
        kernel,
        out_shape=jax.ShapeDtypeStruct((B, v_pad), jnp.float32),
        grid_spec=grid_spec,
        compiler_params=pltpu.CompilerParams(dimension_semantics=("parallel",)),
        cost_estimate=cost,
    )(idx, feats, w_ve_c, b_ve.reshape(1, -1).astype(jnp.float32),
      w_emb.astype(jnp.float32), w_dec_p)

    return out_padded[:, :vocab]


def reference_forward(visual_input, text_input, params):
    """Pure-JAX reference mirroring the PyTorch forward exactly (f32, HIGHEST precision)."""
    hp = lax.Precision.HIGHEST
    B = visual_input.shape[0]
    feats = visual_input.reshape(B, 1, -1).astype(jnp.float32)
    v = jnp.einsum('bsd,hd->bsh', feats, params["w_ve"], precision=hp) + params["b_ve"]
    v = v[:, 0, :]                                                          # squeeze(1)
    probs = jnp.matmul(v, params["w_emb"].T, precision=hp)                  # (B, V)
    idx = text_input.reshape(-1)
    g = probs[:, idx]                                                       # (B, B)
    att = jax.nn.softmax(g, axis=0)                                         # Softmax(dim=0)
    h = jnp.matmul(att.T, v, precision=hp)                                  # (B, H)
    return jnp.matmul(h, params["w_dec"].T, precision=hp)                   # decoder


if __name__ == "__main__":
    # Small shapes consistent with the module.
    B, C, Hs, Ws = 8, 4, 8, 8
    visual_dim = C * Hs * Ws          # 256 (extractor = flatten glue)
    hidden = 32
    vocab = 64

    key = jax.random.PRNGKey(0)
    k1, k2, k3, k4, k5, k6 = jax.random.split(key, 6)

    # PyTorch-like init scales (Linear: U(+-1/sqrt(fan_in)); Embedding: N(0,1)) so outputs
    # have O(0.3) magnitude and the tolerance checks below are meaningful, not vacuous.
    s_ve = 1.0 / (visual_dim ** 0.5)
    s_dec = 1.0 / (hidden ** 0.5)
    params = {
        "w_ve":  jax.random.uniform(k1, (hidden, visual_dim), jnp.float32, -s_ve, s_ve),
        "b_ve":  jax.random.uniform(k2, (hidden,), jnp.float32, -s_ve, s_ve),
        "w_emb": jax.random.normal(k3, (vocab, hidden), dtype=jnp.float32),
        "w_dec": jax.random.uniform(k4, (vocab, hidden), jnp.float32, -s_dec, s_dec),
    }

    visual_input = jax.random.normal(k5, (B, C, Hs, Ws), dtype=jnp.float32)
    text_input = jax.random.randint(k6, (B, 1), 0, vocab, dtype=jnp.int32)

    ref = jax.block_until_ready(reference_forward(visual_input, text_input, params))

    # (a) Validation path: f32 MXU operands + exact softmax divide -> tight check.
    out_f32 = jax.block_until_ready(
        attention_model2_forward(visual_input, text_input, params,
                                 mxu_dtype=jnp.float32, approx_softmax_recip=False))
    assert out_f32.shape == (B, vocab)
    assert jnp.allclose(out_f32, ref, atol=5e-3, rtol=5e-3), "f32 kernel mismatch vs reference"

    # (b) Production path (perf review): bf16 MXU operands + EUP approx reciprocal.
    #     Error budget: bf16 operand rounding through encoder -> softmax -> decoder gives
    #     worst-element absolute error ~1e-2 on outputs of ~0.3 magnitude.
    out_bf16 = jax.block_until_ready(
        attention_model2_forward(visual_input, text_input, params,
                                 mxu_dtype=jnp.bfloat16, approx_softmax_recip=True))
    assert out_bf16.shape == (B, vocab)
    assert jnp.allclose(out_bf16, ref, atol=5e-2, rtol=5e-2), "bf16 kernel mismatch vs reference"

    print("KERNEL_OK")
</pallas_src>

<mosaic_0001>
module attributes {stable_mosaic.version = 11 : i64} {
  func.func @attention2_kernel(%arg0: i32, %arg1: memref<8xi32, #tpu.memory_space<smem>>, %arg2: memref<8x256xf32, #tpu.memory_space<vmem>>, %arg3: memref<32x256xf32, #tpu.memory_space<vmem>>, %arg4: memref<1x32xf32, #tpu.memory_space<vmem>>, %arg5: memref<64x32xf32, #tpu.memory_space<vmem>>, %arg6: memref<128x32xf32, #tpu.memory_space<vmem>>, %arg7: memref<8x128xf32, #tpu.memory_space<vmem>>, %arg8: memref<8x32xf32, #tpu.memory_space<vmem>>) attributes {dimension_semantics = [#tpu.dimension_semantics<parallel>], iteration_bounds = array<i64: 1>, scalar_prefetch = 1 : i64, scratch_operands = 1 : i64, tpu.core_type = #tpu.core_type<tc>, window_params = [{pipeline_mode = #tpu.pipeline_mode<synchronous>, transform_indices = @transform_0, window_bounds = array<i64: 8, 256>}, {pipeline_mode = #tpu.pipeline_mode<synchronous>, transform_indices = @transform_1, window_bounds = array<i64: 32, 256>}, {pipeline_mode = #tpu.pipeline_mode<synchronous>, transform_indices = @transform_2, window_bounds = array<i64: 1, 32>}, {pipeline_mode = #tpu.pipeline_mode<synchronous>, transform_indices = @transform_3, window_bounds = array<i64: 64, 32>}, {transform_indices = @transform_4, window_bounds = array<i64: 128, 32>}, {transform_indices = @transform_5, window_bounds = array<i64: 8, 128>}]} {
    %c0 = arith.constant 0 : index
    %0 = memref.load %arg1[%c0] : memref<8xi32, #tpu.memory_space<smem>>
    %c0_i32 = arith.constant 0 : i32
    %c63_i32 = arith.constant 63 : i32
    %1 = arith.maxsi %c0_i32, %0 : i32
    %2 = arith.minsi %c63_i32, %1 : i32
    %3 = arith.index_cast %2 : i32 to index
    %c0_0 = arith.constant 0 : index
    %4 = vector.load %arg5[%3, %c0_0] : memref<64x32xf32, #tpu.memory_space<vmem>>, vector<1x32xf32>
    %c0_1 = arith.constant 0 : index
    %c0_2 = arith.constant 0 : index
    %5 = vector.load %arg8[%c0_1, %c0_2] : memref<8x32xf32, #tpu.memory_space<vmem>>, vector<1x32xf32>
    tpu.vector_store %arg8[%c0_1, %c0_2], %4 {strides = array<i32>} : memref<8x32xf32, #tpu.memory_space<vmem>>, vector<1x32xf32>,
    %c1 = arith.constant 1 : index
    %6 = memref.load %arg1[%c1] : memref<8xi32, #tpu.memory_space<smem>>
    %c0_i32_3 = arith.constant 0 : i32
    %c63_i32_4 = arith.constant 63 : i32
    %7 = arith.maxsi %c0_i32_3, %6 : i32
    %8 = arith.minsi %c63_i32_4, %7 : i32
    %9 = arith.index_cast %8 : i32 to index
    %c0_5 = arith.constant 0 : index
    %10 = vector.load %arg5[%9, %c0_5] : memref<64x32xf32, #tpu.memory_space<vmem>>, vector<1x32xf32>
    %c1_6 = arith.constant 1 : index
    %c0_7 = arith.constant 0 : index
    %11 = vector.load %arg8[%c1_6, %c0_7] : memref<8x32xf32, #tpu.memory_space<vmem>>, vector<1x32xf32>
    tpu.vector_store %arg8[%c1_6, %c0_7], %10 {strides = array<i32>} : memref<8x32xf32, #tpu.memory_space<vmem>>, vector<1x32xf32>,
    %c2 = arith.constant 2 : index
    %12 = memref.load %arg1[%c2] : memref<8xi32, #tpu.memory_space<smem>>
    %c0_i32_8 = arith.constant 0 : i32
    %c63_i32_9 = arith.constant 63 : i32
    %13 = arith.maxsi %c0_i32_8, %12 : i32
    %14 = arith.minsi %c63_i32_9, %13 : i32
    %15 = arith.index_cast %14 : i32 to index
    %c0_10 = arith.constant 0 : index
    %16 = vector.load %arg5[%15, %c0_10] : memref<64x32xf32, #tpu.memory_space<vmem>>, vector<1x32xf32>
    %c2_11 = arith.constant 2 : index
    %c0_12 = arith.constant 0 : index
    %17 = vector.load %arg8[%c2_11, %c0_12] : memref<8x32xf32, #tpu.memory_space<vmem>>, vector<1x32xf32>
    tpu.vector_store %arg8[%c2_11, %c0_12], %16 {strides = array<i32>} : memref<8x32xf32, #tpu.memory_space<vmem>>, vector<1x32xf32>,
    %c3 = arith.constant 3 : index
    %18 = memref.load %arg1[%c3] : memref<8xi32, #tpu.memory_space<smem>>
    %c0_i32_13 = arith.constant 0 : i32
    %c63_i32_14 = arith.constant 63 : i32
    %19 = arith.maxsi %c0_i32_13, %18 : i32
    %20 = arith.minsi %c63_i32_14, %19 : i32
    %21 = arith.index_cast %20 : i32 to index
    %c0_15 = arith.constant 0 : index
    %22 = vector.load %arg5[%21, %c0_15] : memref<64x32xf32, #tpu.memory_space<vmem>>, vector<1x32xf32>
    %c3_16 = arith.constant 3 : index
    %c0_17 = arith.constant 0 : index
    %23 = vector.load %arg8[%c3_16, %c0_17] : memref<8x32xf32, #tpu.memory_space<vmem>>, vector<1x32xf32>
    tpu.vector_store %arg8[%c3_16, %c0_17], %22 {strides = array<i32>} : memref<8x32xf32, #tpu.memory_space<vmem>>, vector<1x32xf32>,
    %c4 = arith.constant 4 : index
    %24 = memref.load %arg1[%c4] : memref<8xi32, #tpu.memory_space<smem>>
    %c0_i32_18 = arith.constant 0 : i32
    %c63_i32_19 = arith.constant 63 : i32
    %25 = arith.maxsi %c0_i32_18, %24 : i32
    %26 = arith.minsi %c63_i32_19, %25 : i32
    %27 = arith.index_cast %26 : i32 to index
    %c0_20 = arith.constant 0 : index
    %28 = vector.load %arg5[%27, %c0_20] : memref<64x32xf32, #tpu.memory_space<vmem>>, vector<1x32xf32>
    %c4_21 = arith.constant 4 : index
    %c0_22 = arith.constant 0 : index
    %29 = vector.load %arg8[%c4_21, %c0_22] : memref<8x32xf32, #tpu.memory_space<vmem>>, vector<1x32xf32>
    tpu.vector_store %arg8[%c4_21, %c0_22], %28 {strides = array<i32>} : memref<8x32xf32, #tpu.memory_space<vmem>>, vector<1x32xf32>,
    %c5 = arith.constant 5 : index
    %30 = memref.load %arg1[%c5] : memref<8xi32, #tpu.memory_space<smem>>
    %c0_i32_23 = arith.constant 0 : i32
    %c63_i32_24 = arith.constant 63 : i32
    %31 = arith.maxsi %c0_i32_23, %30 : i32
    %32 = arith.minsi %c63_i32_24, %31 : i32
    %33 = arith.index_cast %32 : i32 to index
    %c0_25 = arith.constant 0 : index
    %34 = vector.load %arg5[%33, %c0_25] : memref<64x32xf32, #tpu.memory_space<vmem>>, vector<1x32xf32>
    %c5_26 = arith.constant 5 : index
    %c0_27 = arith.constant 0 : index
    %35 = vector.load %arg8[%c5_26, %c0_27] : memref<8x32xf32, #tpu.memory_space<vmem>>, vector<1x32xf32>
    tpu.vector_store %arg8[%c5_26, %c0_27], %34 {strides = array<i32>} : memref<8x32xf32, #tpu.memory_space<vmem>>, vector<1x32xf32>,
    %c6 = arith.constant 6 : index
    %36 = memref.load %arg1[%c6] : memref<8xi32, #tpu.memory_space<smem>>
    %c0_i32_28 = arith.constant 0 : i32
    %c63_i32_29 = arith.constant 63 : i32
    %37 = arith.maxsi %c0_i32_28, %36 : i32
    %38 = arith.minsi %c63_i32_29, %37 : i32
    %39 = arith.index_cast %38 : i32 to index
    %c0_30 = arith.constant 0 : index
    %40 = vector.load %arg5[%39, %c0_30] : memref<64x32xf32, #tpu.memory_space<vmem>>, vector<1x32xf32>
    %c6_31 = arith.constant 6 : index
    %c0_32 = arith.constant 0 : index
    %41 = vector.load %arg8[%c6_31, %c0_32] : memref<8x32xf32, #tpu.memory_space<vmem>>, vector<1x32xf32>
    tpu.vector_store %arg8[%c6_31, %c0_32], %40 {strides = array<i32>} : memref<8x32xf32, #tpu.memory_space<vmem>>, vector<1x32xf32>,
    %c7 = arith.constant 7 : index
    %42 = memref.load %arg1[%c7] : memref<8xi32, #tpu.memory_space<smem>>
    %c0_i32_33 = arith.constant 0 : i32
    %c63_i32_34 = arith.constant 63 : i32
    %43 = arith.maxsi %c0_i32_33, %42 : i32
    %44 = arith.minsi %c63_i32_34, %43 : i32
    %45 = arith.index_cast %44 : i32 to index
    %c0_35 = arith.constant 0 : index
    %46 = vector.load %arg5[%45, %c0_35] : memref<64x32xf32, #tpu.memory_space<vmem>>, vector<1x32xf32>
    %c7_36 = arith.constant 7 : index
    %c0_37 = arith.constant 0 : index
    %47 = vector.load %arg8[%c7_36, %c0_37] : memref<8x32xf32, #tpu.memory_space<vmem>>, vector<1x32xf32>
    tpu.vector_store %arg8[%c7_36, %c0_37], %46 {strides = array<i32>} : memref<8x32xf32, #tpu.memory_space<vmem>>, vector<1x32xf32>,
    %c0_38 = arith.constant 0 : index
    %c0_39 = arith.constant 0 : index
    %48 = vector.load %arg2[%c0_38, %c0_39] : memref<8x256xf32, #tpu.memory_space<vmem>>, vector<8x256xf32>
    %c0_40 = arith.constant 0 : index
    %c0_41 = arith.constant 0 : index
    %49 = vector.load %arg3[%c0_40, %c0_41] : memref<32x256xf32, #tpu.memory_space<vmem>>, vector<32x256xf32>
    %cst = arith.constant dense<0.000000e+00> : vector<8x32xf32>
    %50 = tpu.matmul %48, %49, %cst {dimension_numbers = #tpu.dot_dimension_numbers<[1], [1], [0], [0], [0, 0, 1, 0], [], []>} : vector<8x256xf32>, vector<32x256xf32>, vector<8x32xf32> -> vector<8x32xf32>
    %c0_42 = arith.constant 0 : index
    %c0_43 = arith.constant 0 : index
    %51 = vector.load %arg4[%c0_42, %c0_43] : memref<1x32xf32, #tpu.memory_space<vmem>>, vector<1x32xf32>
    %52 = vector.broadcast %51 : vector<1x32xf32> to vector<8x32xf32>
    %53 = arith.addf %50, %52 : vector<8x32xf32>
    %c0_44 = arith.constant 0 : index
    %c0_45 = arith.constant 0 : index
    %54 = vector.load %arg8[%c0_44, %c0_45] : memref<8x32xf32, #tpu.memory_space<vmem>>, vector<8x32xf32>
    %cst_46 = arith.constant dense<0.000000e+00> : vector<8x8xf32>
    %55 = tpu.matmul %53, %54, %cst_46 {dimension_numbers = #tpu.dot_dimension_numbers<[1], [1], [0], [0], [0, 0, 1, 0], [], []>} : vector<8x32xf32>, vector<8x32xf32>, vector<8x8xf32> -> vector<8x8xf32>
    %cst_47 = arith.constant dense<0xFF800000> : vector<8xf32>
    %56 = vector.multi_reduction <maximumf>, %55, %cst_47 [0] : vector<8x8xf32> to vector<8xf32>
    %57 = vector.shape_cast %56 : vector<8xf32> to vector<1x8xf32>
    %58 = vector.broadcast %57 : vector<1x8xf32> to vector<8x8xf32>
    %59 = arith.subf %55, %58 : vector<8x8xf32>
    %60 = math.exp %59 : vector<8x8xf32>
    %cst_48 = arith.constant dense<0.000000e+00> : vector<8xf32>
    %61 = vector.multi_reduction <add>, %60, %cst_48 [0] : vector<8x8xf32> to vector<8xf32>
    %62 = vector.shape_cast %61 : vector<8xf32> to vector<1x8xf32>
    %63 = vector.broadcast %62 : vector<1x8xf32> to vector<8x8xf32>
    %64 = arith.divf %60, %63 : vector<8x8xf32>
    %cst_49 = arith.constant dense<0.000000e+00> : vector<8x32xf32>
    %65 = tpu.matmul %64, %53, %cst_49 {dimension_numbers = #tpu.dot_dimension_numbers<[0], [0], [1], [1], [0, 1, 1, 1], [], []>} : vector<8x8xf32>, vector<8x32xf32>, vector<8x32xf32> -> vector<8x32xf32>
    %c0_50 = arith.constant 0 : index
    %c0_51 = arith.constant 0 : index
    %66 = vector.load %arg6[%c0_50, %c0_51] : memref<128x32xf32, #tpu.memory_space<vmem>>, vector<128x32xf32>
    %cst_52 = arith.constant dense<0.000000e+00> : vector<8x128xf32>
    %67 = tpu.matmul %65, %66, %cst_52 {dimension_numbers = #tpu.dot_dimension_numbers<[1], [1], [0], [0], [0, 0, 1, 0], [], []>} : vector<8x32xf32>, vector<128x32xf32>, vector<8x128xf32> -> vector<8x128xf32>
    %c0_53 = arith.constant 0 : index
    %c0_54 = arith.constant 0 : index
    %68 = vector.load %arg7[%c0_53, %c0_54] : memref<8x128xf32, #tpu.memory_space<vmem>>, vector<8x128xf32>
    tpu.vector_store %arg7[%c0_53, %c0_54], %67 {strides = array<i32>} : memref<8x128xf32, #tpu.memory_space<vmem>>, vector<8x128xf32>,
    return
  }
  func.func @transform_0(%arg0: i32, %arg1: memref<8xi32, #tpu.memory_space<smem>>) -> (i32, i32) {
    %c0_i32 = arith.constant 0 : i32
    %c0_i32_0 = arith.constant 0 : i32
    %c0_i32_1 = arith.constant 0 : i32
    return %c0_i32, %c0_i32_0 : i32, i32
  }
  func.func @transform_1(%arg0: i32, %arg1: memref<8xi32, #tpu.memory_space<smem>>) -> (i32, i32) {
    %c0_i32 = arith.constant 0 : i32
    %c0_i32_0 = arith.constant 0 : i32
    %c0_i32_1 = arith.constant 0 : i32
    return %c0_i32, %c0_i32_0 : i32, i32
  }
  func.func @transform_2(%arg0: i32, %arg1: memref<8xi32, #tpu.memory_space<smem>>) -> (i32, i32) {
    %c0_i32 = arith.constant 0 : i32
    %c0_i32_0 = arith.constant 0 : i32
    %c0_i32_1 = arith.constant 0 : i32
    return %c0_i32, %c0_i32_0 : i32, i32
  }
  func.func @transform_3(%arg0: i32, %arg1: memref<8xi32, #tpu.memory_space<smem>>) -> (i32, i32) {
    %c0_i32 = arith.constant 0 : i32
    %c0_i32_0 = arith.constant 0 : i32
    %c0_i32_1 = arith.constant 0 : i32
    return %c0_i32, %c0_i32_0 : i32, i32
  }
  func.func @transform_4(%arg0: i32, %arg1: memref<8xi32, #tpu.memory_space<smem>>) -> (i32, i32) {
    %c0_i32 = arith.constant 0 : i32
    %c0_i32_0 = arith.constant 0 : i32
    return %arg0, %c0_i32 : i32, i32
  }
  func.func @transform_5(%arg0: i32, %arg1: memref<8xi32, #tpu.memory_space<smem>>) -> (i32, i32) {
    %c0_i32 = arith.constant 0 : i32
    %c0_i32_0 = arith.constant 0 : i32
    return %c0_i32, %arg0 : i32, i32
  }
}

</mosaic_0001>

<llo_original>
// kernel: tpu_custom_call.1
$region0: #{tpu_custom_call.1}
  #allocation0 [shape = 'u32[]', space=smem, size = 0x4, offset = 0x4, fixed_abs, tag = 'smem constant byte address 0x4 - core index']
  #allocation1 [shape = 'u32[144,128]{1,0:T(1,128)}', space=vmem, size = 0x12000, scoped, tag = 'internal scratch']
  #allocation2 [shape = 'f32[8,32]{1,0:T(8,128)}', space=vmem, size = 0x1000, scoped, tag = 'scratch operand']
  #allocation3 [shape = 's32[1]{0}', space=sflag, size = 0x4, scoped, tag = 'scoped memory for tpu_custom_call.1']
  #allocation4 [shape = 'u8[512]{0}', space=smem, size = 0x200, scoped, tag = 'prefetched SMEM operand 0']
  %s0 = inlined_call_operand.vmem [shape: s32[8], index: 0, kind: input, shape index: {}]
  %s1 = inlined_call_operand.vmem [shape: f32[8,256], index: 1, kind: input, shape index: {}]
  %s2 = inlined_call_operand.vmem [shape: f32[32,256], index: 2, kind: input, shape index: {}]
  %s3 = inlined_call_operand.vmem [shape: f32[1,32], index: 3, kind: input, shape index: {}]
  %s4 = inlined_call_operand.vmem [shape: f32[64,32], index: 4, kind: input, shape index: {}]
  %s5 = inlined_call_operand.vmem [shape: f32[128,32], index: 5, kind: input, shape index: {}]
  %s6 = inlined_call_operand.hbm [shape: f32[8,128], index: 6, kind: output, shape index: {}]
  %s7 = sld [smem:[#allocation0]]
  $region30: #{tpu_custom_call.1} parent=0
    _
  %s9 = ssub.s32 1, %s7
  %s10 = scalar_select 0, %s9, %s7
  %s11 = sshll.u32 %s0, 4
  %s12 = int_to_ptr.vmem [resolvable:$true] %s11
  %14 = dma.vmem_to_smem %s12, 16, [#allocation4], [#allocation3]
  %15 = dma.done [#allocation3], 16
  %16 = sfence
  $region1: #{tpu_custom_call.1} parent=0
    #allocation5 [shape = 'u8[4096]{0}', space=vmem, size = 0x1000, scoped, tag = 'output window, operand 0, single buffered']
    #allocation6 [shape = 's32[1]{0}', space=sflag, size = 0x4, scoped, tag = 'scoped memory for tpu_custom_call.1']
    %17 = vsyncpa [#allocation6], 0
    // Predicated region
    $region2: #{tpu_custom_call.1} parent=1 // pred_check
      _
    $region3: #{tpu_custom_call.1} parent=1 // pred_check_branch
      %19 = sbr.rel (0) target = $region5
    $region4: #{tpu_custom_call.1} parent=1 // pred_region
      _
    $region5: #{tpu_custom_call.1} parent=1 // pred_fallthru
      _
    // Predicated region
    $region6: #{tpu_custom_call.1} parent=1 // pred_check
      _
    $region7: #{tpu_custom_call.1} parent=1 // pred_check_branch
      %21 = sbr.rel (0) target = $region9
    $region8: #{tpu_custom_call.1} parent=1 // pred_region
      _
    $region9: #{tpu_custom_call.1} parent=1 // pred_fallthru
      _
    // Predicated region
    $region10: #{tpu_custom_call.1} parent=1 // pred_check
      _
    $region11: #{tpu_custom_call.1} parent=1 // pred_check_branch
      %23 = sbr.rel (0) target = $region13
    $region12: #{tpu_custom_call.1} parent=1 // pred_region
      _
    $region13: #{tpu_custom_call.1} parent=1 // pred_fallthru
      _
    // Predicated region
    $region14: #{tpu_custom_call.1} parent=1 // pred_check
      _
    $region15: #{tpu_custom_call.1} parent=1 // pred_check_branch
      %25 = sbr.rel (0) target = $region17
    $region16: #{tpu_custom_call.1} parent=1 // pred_region
      _
    $region17: #{tpu_custom_call.1} parent=1 // pred_fallthru
      _
    // Predicated region
    $region18: #{tpu_custom_call.1} parent=1 // pred_check
      _
    $region19: #{tpu_custom_call.1} parent=1 // pred_check_branch
      %27 = sbr.rel (0) target = $region21
    $region20: #{tpu_custom_call.1} parent=1 // pred_region
      _
    $region21: #{tpu_custom_call.1} parent=1 // pred_fallthru
      _
    %s28 = sld [smem:[#allocation4]]
    %p29 = scmp.gt.s32.totalorder %s28, 0
    %s30 = scalar_select %p29, %s28, 0
    %p31 = scmp.lt.s32.totalorder %s30, 63
    %s32 = scalar_select %p31, %s30, 63
    %s33 = scalar_lea.vmem %s4, %s32
    %v34 = vld [vmem:[%s33] sm:$0x1]
    %vm35 = vcmask 253952
    %36 = vst.msk [vmem:[#allocation2] sm:$0x1] %vm35, %v34
    %s37 = sld [smem:[#allocation4 + $0x1]]
    %p38 = scmp.gt.s32.totalorder %s37, 0
    %s39 = scalar_select %p38, %s37, 0
    %p40 = scmp.lt.s32.totalorder %s39, 63
    %s41 = scalar_select %p40, %s39, 63
    %s42 = scalar_lea.vmem %s4, %s41
    %v43 = vld [vmem:[%s42] sm:$0x1]
    %44 = vst.msk [vmem:[#allocation2 + $0x1] sm:$0x1] %vm35, %v43
    %s45 = sld [smem:[#allocation4 + $0x2]]
    %p46 = scmp.gt.s32.totalorder %s45, 0
    %s47 = scalar_select %p46, %s45, 0
    %p48 = scmp.lt.s32.totalorder %s47, 63
    %s49 = scalar_select %p48, %s47, 63
    %s50 = scalar_lea.vmem %s4, %s49
    %v51 = vld [vmem:[%s50] sm:$0x1]
    %52 = vst.msk [vmem:[#allocation2 + $0x2] sm:$0x1] %vm35, %v51
    %s53 = sld [smem:[#allocation4 + $0x3]]
    %p54 = scmp.gt.s32.totalorder %s53, 0
    %s55 = scalar_select %p54, %s53, 0
    %p56 = scmp.lt.s32.totalorder %s55, 63
    %s57 = scalar_select %p56, %s55, 63
    %s58 = scalar_lea.vmem %s4, %s57
    %v59 = vld [vmem:[%s58] sm:$0x1]
    %60 = vst.msk [vmem:[#allocation2 + $0x3] sm:$0x1] %vm35, %v59
    %s61 = sld [smem:[#allocation4 + $0x4]]
    %p62 = scmp.gt.s32.totalorder %s61, 0
    %s63 = scalar_select %p62, %s61, 0
    %p64 = scmp.lt.s32.totalorder %s63, 63
    %s65 = scalar_select %p64, %s63, 63
    %s66 = scalar_lea.vmem %s4, %s65
    %v67 = vld [vmem:[%s66] sm:$0x1]
    %68 = vst.msk [vmem:[#allocation2 + $0x4] sm:$0x1] %vm35, %v67
    %s69 = sld [smem:[#allocation4 + $0x5]]
    %p70 = scmp.gt.s32.totalorder %s69, 0
    %s71 = scalar_select %p70, %s69, 0
    %p72 = scmp.lt.s32.totalorder %s71, 63
    %s73 = scalar_select %p72, %s71, 63
    %s74 = scalar_lea.vmem %s4, %s73
    %v75 = vld [vmem:[%s74] sm:$0x1]
    %76 = vst.msk [vmem:[#allocation2 + $0x5] sm:$0x1] %vm35, %v75
    %s77 = sld [smem:[#allocation4 + $0x6]]
    %p78 = scmp.gt.s32.totalorder %s77, 0
    %s79 = scalar_select %p78, %s77, 0
    %p80 = scmp.lt.s32.totalorder %s79, 63
    %s81 = scalar_select %p80, %s79, 63
    %s82 = scalar_lea.vmem %s4, %s81
    %v83 = vld [vmem:[%s82] sm:$0x1]
    %84 = vst.msk [vmem:[#allocation2 + $0x6] sm:$0x1] %vm35, %v83
    %s85 = sld [smem:[#allocation4 + $0x7]]
    %p86 = scmp.gt.s32.totalorder %s85, 0
    %s87 = scalar_select %p86, %s85, 0
    %p88 = scmp.lt.s32.totalorder %s87, 63
    %s89 = scalar_select %p88, %s87, 63
    %s90 = scalar_lea.vmem %s4, %s89
    %v91 = vld [vmem:[%s90] sm:$0x1]
    %92 = vst.msk [vmem:[#allocation2 + $0x7] sm:$0x1] %vm35, %v91
    %v93 = vld [vmem:[%s1] sm:$0xff]
    %v94 = vld [vmem:[%s1 + $0x8] sm:$0xff]
    %v95 = vld [vmem:[%s2] sm:$0xff]
    %v96 = vld [vmem:[%s2 + $0x8] sm:$0xff]
    %v97 = vld [vmem:[%s2 + $0x10] sm:$0xff]
    %v98 = vld [vmem:[%s2 + $0x18] sm:$0xff]
    %v99 = vld [vmem:[%s2 + $0x20] sm:$0xff]
    %v100 = vld [vmem:[%s2 + $0x28] sm:$0xff]
    %v101 = vld [vmem:[%s2 + $0x30] sm:$0xff]
    %v102 = vld [vmem:[%s2 + $0x38] sm:$0xff]
    %v103 = vld [vmem:[%s3] sm:$0x1]
    %v105 = vlaneseq
    %v106 = vshrl.u32 %v105, 7
    %v107 = vsub.s32 0, %v106
    %v108 = vrot.slane %v103, %v107
    %110 = vmatprep.subr.mxu0 %v96
    %111 = vmatpush1.xpose.msra.mxu0 %v95
    %112 = vmatprep.subr.mxu0 %v98
    %113 = vmatpush1.xpose.msra.mxu0 %v97
    %114 = vmatprep.subr.mxu0 %v100
    %115 = vmatpush1.xpose.msra.mxu0 %v99
    %116 = vmatprep.subr.mxu0 %v102
    %117 = vmatpush1.xpose.msra.mxu0 %v101
    %118 = vmatprep.subr.mxu0 0.0
    %119 = vmatpush1.xpose.msra.mxu0 0.0
    %120 = vmatprep.subr.mxu0 0.0
    %121 = vmatpush1.xpose.msra.mxu0 0.0
    %122 = vmatprep.subr.mxu0 0.0
    %123 = vmatpush1.xpose.msra.mxu0 0.0
    %124 = vmatprep.subr.mxu0 0.0
    %125 = vmatpush1.xpose.msra.mxu0 0.0
    %126 = vmatprep.subr.mxu0 0.0
    %127 = vmatpush1.xpose.msra.mxu0 0.0
    %128 = vmatprep.subr.mxu0 0.0
    %129 = vmatpush1.xpose.msra.mxu0 0.0
    %130 = vmatprep.subr.mxu0 0.0
    %131 = vmatpush1.xpose.msra.mxu0 0.0
    %132 = vmatprep.subr.mxu0 0.0
    %133 = vmatpush1.xpose.msra.mxu0 0.0
    %134 = vmatprep.subr.mxu0 0.0
    %135 = vmatpush1.xpose.msra.mxu0 0.0
    %136 = vmatprep.subr.mxu0 0.0
    %137 = vmatpush1.xpose.msra.mxu0 0.0
    %138 = vmatprep.subr.mxu0 0.0
    %139 = vmatpush1.xpose.msra.mxu0 0.0
    %140 = vmatprep.subr.mxu0 0.0
    %141 = vmatpush1.xpose.msra.mxu0 0.0
    %142 = vmatprep.subr.mxu0 0.0
    %143 = vmatpush1.xpose.msra.mxu0 0.0
    %144 = vmatprep.subr.mxu0 0.0
    %145 = vmatpush1.xpose.msra.mxu0 0.0
    %146 = vmatprep.subr.mxu0 0.0
    %147 = vmatpush1.xpose.msra.mxu0 0.0
    %148 = vmatprep.subr.mxu0 0.0
    %149 = vmatpush1.xpose.msra.mxu0 0.0
    %150 = vmatprep.subr.mxu0 0.0
    %151 = vmatpush1.xpose.msra.mxu0 0.0
    %152 = vmatprep.subr.mxu0 0.0
    %153 = vmatpush1.xpose.msra.mxu0 0.0
    %154 = vmatprep.subr.mxu0 0.0
    %155 = vmatpush1.xpose.msra.mxu0 0.0
    %156 = vmatprep.subr.mxu0 0.0
    %157 = vmatpush1.xpose.msra.mxu0 0.0
    %158 = vmatprep.subr.mxu0 0.0
    %159 = vmatpush1.xpose.msra.mxu0 0.0
    %160 = vmatprep.subr.mxu0 0.0
    %161 = vmatpush1.xpose.msra.mxu0 0.0
    %162 = vmatprep.subr.mxu0 0.0
    %163 = vmatpush1.xpose.msra.mxu0 0.0
    %164 = vmatprep.subr.mxu0 0.0
    %165 = vmatpush1.xpose.msra.mxu0 0.0
    %166 = vmatprep.subr.mxu0 0.0
    %167 = vmatpush1.xpose.msra.mxu0 0.0
    %168 = vmatprep.subr.mxu0 0.0
    %169 = vmatpush1.xpose.msra.mxu0 0.0
    %170 = vmatprep.subr.mxu0 0.0
    %171 = vmatpush1.xpose.msra.mxu0 0.0
    %172 = vmatprep.subr.mxu0 0.0
    %173 = vmatpush1.xpose.msra.mxu0 0.0
    %174 = vmatprep.mubr.f32.mxu0 %v94
    %175 = vmatmul.mubr.f32.gmra.mrb[0].mxu0 %v93
    %v176 = vpop.f32.mrb[0].mxu0
    %v177 = vadd.f32 %v108, %v176
    %v178 = vpop.f32.mrb[0].mxu0
    %179 = vdwg.mxu0
    %v180 = vld [vmem:[#allocation2] sm:$0xff]
    %vm181 = vcmask 261120
    %v183 = vsel %vm181, %v177, 0
    %v186 = vsel %vm181, %v180, 0
    %188 = vmatprep.subr.mxu0 0.0
    %189 = vmatpush1.xpose.msra.mxu0 %v186
    %190 = vmatprep.subr.mxu0 0.0
    %191 = vmatpush1.xpose.msra.mxu0 0.0
    %192 = vmatprep.subr.mxu0 0.0
    %193 = vmatpush1.xpose.msra.mxu0 0.0
    %194 = vmatprep.subr.mxu0 0.0
    %195 = vmatpush1.xpose.msra.mxu0 0.0
    %196 = vmatprep.subr.mxu0 0.0
    %197 = vmatpush1.xpose.msra.mxu0 0.0
    %198 = vmatprep.subr.mxu0 0.0
    %199 = vmatpush1.xpose.msra.mxu0 0.0
    %200 = vmatprep.subr.mxu0 0.0
    %201 = vmatpush1.xpose.msra.mxu0 0.0
    %202 = vmatprep.subr.mxu0 0.0
    %203 = vmatpush1.xpose.msra.mxu0 0.0
    %204 = vmatprep.subr.mxu0 0.0
    %205 = vmatpush1.xpose.msra.mxu0 0.0
    %206 = vmatprep.subr.mxu0 0.0
    %207 = vmatpush1.xpose.msra.mxu0 0.0
    %208 = vmatprep.subr.mxu0 0.0
    %209 = vmatpush1.xpose.msra.mxu0 0.0
    %210 = vmatprep.subr.mxu0 0.0
    %211 = vmatpush1.xpose.msra.mxu0 0.0
    %212 = vmatprep.subr.mxu0 0.0
    %213 = vmatpush1.xpose.msra.mxu0 0.0
    %214 = vmatprep.subr.mxu0 0.0
    %215 = vmatpush1.xpose.msra.mxu0 0.0
    %216 = vmatprep.subr.mxu0 0.0
    %217 = vmatpush1.xpose.msra.mxu0 0.0
    %218 = vmatprep.subr.mxu0 0.0
    %219 = vmatpush1.xpose.msra.mxu0 0.0
    %220 = vmatprep.subr.mxu0 0.0
    %221 = vmatpush1.xpose.msra.mxu0 0.0
    %222 = vmatprep.subr.mxu0 0.0
    %223 = vmatpush1.xpose.msra.mxu0 0.0
    %224 = vmatprep.subr.mxu0 0.0
    %225 = vmatpush1.xpose.msra.mxu0 0.0
    %226 = vmatprep.subr.mxu0 0.0
    %227 = vmatpush1.xpose.msra.mxu0 0.0
    %228 = vmatprep.subr.mxu0 0.0
    %229 = vmatpush1.xpose.msra.mxu0 0.0
    %230 = vmatprep.subr.mxu0 0.0
    %231 = vmatpush1.xpose.msra.mxu0 0.0
    %232 = vmatprep.subr.mxu0 0.0
    %233 = vmatpush1.xpose.msra.mxu0 0.0
    %234 = vmatprep.subr.mxu0 0.0
    %235 = vmatpush1.xpose.msra.mxu0 0.0
    %236 = vmatprep.subr.mxu0 0.0
    %237 = vmatpush1.xpose.msra.mxu0 0.0
    %238 = vmatprep.subr.mxu0 0.0
    %239 = vmatpush1.xpose.msra.mxu0 0.0
    %240 = vmatprep.subr.mxu0 0.0
    %241 = vmatpush1.xpose.msra.mxu0 0.0
    %242 = vmatprep.subr.mxu0 0.0
    %243 = vmatpush1.xpose.msra.mxu0 0.0
    %244 = vmatprep.subr.mxu0 0.0
    %245 = vmatpush1.xpose.msra.mxu0 0.0
    %246 = vmatprep.subr.mxu0 0.0
    %247 = vmatpush1.xpose.msra.mxu0 0.0
    %248 = vmatprep.subr.mxu0 0.0
    %249 = vmatpush1.xpose.msra.mxu0 0.0
    %250 = vmatprep.subr.mxu0 0.0
    %251 = vmatpush1.xpose.msra.mxu0 0.0
    %252 = vmatprep.mubr.f32.mxu0 0.0
    %253 = vmatmul.mubr.f32.gmra.mrb[0].mxu0 %v183
    %v254 = vpop.f32.mrb[0].mxu0
    %v255 = vadd.f32 0.0, %v254
    %v256 = vpop.f32.mrb[0].mxu0
    %257 = vdwg.mxu0
    %vm258 = vcmask 64512
    %v259 = vsel %vm258, %v255, -inf
    %v260 = vrot.slane %v259, 4
    %v261 = vmax.f32 %v259, %v260
    %v262 = vrot.slane %v261, 2
    %v263 = vmax.f32 %v261, %v262
    %v264 = vrot.slane %v263, 1
    %v265 = vmax.f32 %v263, %v264
    %v266 = vsub.f32 %v255, %v265
    %v267 = vmul.f32 %v266, 1.442695
    %v268 = vpow.pop %v267
    %v269 = vsel %vm258, %v268, 0.0
    %v270 = vrot.slane %v269, 4
    %v271 = vadd.f32 %v269, %v270
    %v272 = vrot.slane %v271, 2
    %v273 = vadd.f32 %v271, %v272
    %v274 = vrot.slane %v273, 1
    %v275 = vadd.f32 %v273, %v274
    %v276 = vrcp.pop %v275
    %v277 = vmul.f32 %v268, %v276
    %278 = vxpose.xlu0.b32.start [1/16] %v277, 128
    %279 = vxpose.xlu0.b32.cont [2/16] 0.0, 128
    %280 = vxpose.xlu0.b32.cont [3/16] 0.0, 128
    %281 = vxpose.xlu0.b32.cont [4/16] 0.0, 128
    %282 = vxpose.xlu0.b32.cont [5/16] 0.0, 128
    %283 = vxpose.xlu0.b32.cont [6/16] 0.0, 128
    %284 = vxpose.xlu0.b32.cont [7/16] 0.0, 128
    %285 = vxpose.xlu0.b32.cont [8/16] 0.0, 128
    %286 = vxpose.xlu0.b32.cont [9/16] 0.0, 128
    %287 = vxpose.xlu0.b32.cont [10/16] 0.0, 128
    %288 = vxpose.xlu0.b32.cont [11/16] 0.0, 128
    %289 = vxpose.xlu0.b32.cont [12/16] 0.0, 128
    %290 = vxpose.xlu0.b32.cont [13/16] 0.0, 128
    %291 = vxpose.xlu0.b32.cont [14/16] 0.0, 128
    %292 = vxpose.xlu0.b32.cont [15/16] 0.0, 128
    %293 = vxpose.xlu0.b32.end [16/16] 0.0, 128
    %v294 = vpop.trf.xlu0
    %v295 = vpop.trf.xlu0
    %v296 = vpop.trf.xlu0
    %v297 = vpop.trf.xlu0
    %v298 = vpop.trf.xlu0
    %v299 = vpop.trf.xlu0
    %v300 = vpop.trf.xlu0
    %v301 = vpop.trf.xlu0
    %v302 = vpop.trf.xlu0
    %v303 = vpop.trf.xlu0
    %v304 = vpop.trf.xlu0
    %v305 = vpop.trf.xlu0
    %v306 = vpop.trf.xlu0
    %v307 = vpop.trf.xlu0
    %v308 = vpop.trf.xlu0
    %v309 = vpop.trf.xlu0
    %v311 = vsel %vm258, %v294, 0
    %313 = vmatprep.subr.mxu0 0.0
    %314 = vmatpush1.msra.mxu0 %v177
    %315 = vmatprep.subr.mxu0 0.0
    %316 = vmatpush1.msra.mxu0 0.0
    %317 = vmatprep.subr.mxu0 0.0
    %318 = vmatpush1.msra.mxu0 0.0
    %319 = vmatprep.subr.mxu0 0.0
    %320 = vmatpush1.msra.mxu0 0.0
    %321 = vmatprep.subr.mxu0 0.0
    %322 = vmatpush1.msra.mxu0 0.0
    %323 = vmatprep.subr.mxu0 0.0
    %324 = vmatpush1.msra.mxu0 0.0
    %325 = vmatprep.subr.mxu0 0.0
    %326 = vmatpush1.msra.mxu0 0.0
    %327 = vmatprep.subr.mxu0 0.0
    %328 = vmatpush1.msra.mxu0 0.0
    %329 = vmatprep.subr.mxu0 0.0
    %330 = vmatpush1.msra.mxu0 0.0
    %331 = vmatprep.subr.mxu0 0.0
    %332 = vmatpush1.msra.mxu0 0.0
    %333 = vmatprep.subr.mxu0 0.0
    %334 = vmatpush1.msra.mxu0 0.0
    %335 = vmatprep.subr.mxu0 0.0
    %336 = vmatpush1.msra.mxu0 0.0
    %337 = vmatprep.subr.mxu0 0.0
    %338 = vmatpush1.msra.mxu0 0.0
    %339 = vmatprep.subr.mxu0 0.0
    %340 = vmatpush1.msra.mxu0 0.0
    %341 = vmatprep.subr.mxu0 0.0
    %342 = vmatpush1.msra.mxu0 0.0
    %343 = vmatprep.subr.mxu0 0.0
    %344 = vmatpush1.msra.mxu0 0.0
    %345 = vmatprep.subr.mxu0 0.0
    %346 = vmatpush1.msra.mxu0 0.0
    %347 = vmatprep.subr.mxu0 0.0
    %348 = vmatpush1.msra.mxu0 0.0
    %349 = vmatprep.subr.mxu0 0.0
    %350 = vmatpush1.msra.mxu0 0.0
    %351 = vmatprep.subr.mxu0 0.0
    %352 = vmatpush1.msra.mxu0 0.0
    %353 = vmatprep.subr.mxu0 0.0
    %354 = vmatpush1.msra.mxu0 0.0
    %355 = vmatprep.subr.mxu0 0.0
    %356 = vmatpush1.msra.mxu0 0.0
    %357 = vmatprep.subr.mxu0 0.0
    %358 = vmatpush1.msra.mxu0 0.0
    %359 = vmatprep.subr.mxu0 0.0
    %360 = vmatpush1.msra.mxu0 0.0
    %361 = vmatprep.subr.mxu0 0.0
    %362 = vmatpush1.msra.mxu0 0.0
    %363 = vmatprep.subr.mxu0 0.0
    %364 = vmatpush1.msra.mxu0 0.0
    %365 = vmatprep.subr.mxu0 0.0
    %366 = vmatpush1.msra.mxu0 0.0
    %367 = vmatprep.subr.mxu0 0.0
    %368 = vmatpush1.msra.mxu0 0.0
    %369 = vmatprep.subr.mxu0 0.0
    %370 = vmatpush1.msra.mxu0 0.0
    %371 = vmatprep.subr.mxu0 0.0
    %372 = vmatpush1.msra.mxu0 0.0
    %373 = vmatprep.subr.mxu0 0.0
    %374 = vmatpush1.msra.mxu0 0.0
    %375 = vmatprep.subr.mxu0 0.0
    %376 = vmatpush1.msra.mxu0 0.0
    %377 = vmatprep.mubr.f32.mxu0 0.0
    %378 = vmatmul.mubr.f32.gmra.mrb[0].mxu0 %v311
    %v379 = vpop.f32.mrb[0].mxu0
    %v380 = vadd.f32 0.0, %v379
    %v381 = vpop.f32.mrb[0].mxu0
    %382 = vdwg.mxu0
    %v383 = vld [vmem:[%s5] sm:$0xff]
    %v384 = vld [vmem:[%s5 + $0x8] sm:$0xff]
    %v385 = vld [vmem:[%s5 + $0x10] sm:$0xff]
    %v386 = vld [vmem:[%s5 + $0x18] sm:$0xff]
    %v387 = vld [vmem:[%s5 + $0x20] sm:$0xff]
    %v388 = vld [vmem:[%s5 + $0x28] sm:$0xff]
    %v389 = vld [vmem:[%s5 + $0x30] sm:$0xff]
    %v390 = vld [vmem:[%s5 + $0x38] sm:$0xff]
    %v391 = vld [vmem:[%s5 + $0x40] sm:$0xff]
    %v392 = vld [vmem:[%s5 + $0x48] sm:$0xff]
    %v393 = vld [vmem:[%s5 + $0x50] sm:$0xff]
    %v394 = vld [vmem:[%s5 + $0x58] sm:$0xff]
    %v395 = vld [vmem:[%s5 + $0x60] sm:$0xff]
    %v396 = vld [vmem:[%s5 + $0x68] sm:$0xff]
    %v397 = vld [vmem:[%s5 + $0x70] sm:$0xff]
    %v398 = vld [vmem:[%s5 + $0x78] sm:$0xff]
    %v400 = vsel %vm181, %v380, 0
    %v403 = vsel %vm181, %v383, 0
    %v406 = vsel %vm181, %v384, 0
    %v409 = vsel %vm181, %v385, 0
    %v412 = vsel %vm181, %v386, 0
    %v415 = vsel %vm181, %v387, 0
    %v418 = vsel %vm181, %v388, 0
    %v421 = vsel %vm181, %v389, 0
    %v424 = vsel %vm181, %v390, 0
    %v427 = vsel %vm181, %v391, 0
    %v430 = vsel %vm181, %v392, 0
    %v433 = vsel %vm181, %v393, 0
    %v436 = vsel %vm181, %v394, 0
    %v439 = vsel %vm181, %v395, 0
    %v442 = vsel %vm181, %v396, 0
    %v445 = vsel %vm181, %v397, 0
    %v448 = vsel %vm181, %v398, 0
    %450 = vmatprep.subr.mxu0 0.0
    %451 = vmatpush1.xpose.msra.mxu0 %v403
    %452 = vmatprep.subr.mxu0 0.0
    %453 = vmatpush1.xpose.msra.mxu0 %v406
    %454 = vmatprep.subr.mxu0 0.0
    %455 = vmatpush1.xpose.msra.mxu0 %v409
    %456 = vmatprep.subr.mxu0 0.0
    %457 = vmatpush1.xpose.msra.mxu0 %v412
    %458 = vmatprep.subr.mxu0 0.0
    %459 = vmatpush1.xpose.msra.mxu0 %v415
    %460 = vmatprep.subr.mxu0 0.0
    %461 = vmatpush1.xpose.msra.mxu0 %v418
    %462 = vmatprep.subr.mxu0 0.0
    %463 = vmatpush1.xpose.msra.mxu0 %v421
    %464 = vmatprep.subr.mxu0 0.0
    %465 = vmatpush1.xpose.msra.mxu0 %v424
    %466 = vmatprep.subr.mxu0 0.0
    %467 = vmatpush1.xpose.msra.mxu0 %v427
    %468 = vmatprep.subr.mxu0 0.0
    %469 = vmatpush1.xpose.msra.mxu0 %v430
    %470 = vmatprep.subr.mxu0 0.0
    %471 = vmatpush1.xpose.msra.mxu0 %v433
    %472 = vmatprep.subr.mxu0 0.0
    %473 = vmatpush1.xpose.msra.mxu0 %v436
    %474 = vmatprep.subr.mxu0 0.0
    %475 = vmatpush1.xpose.msra.mxu0 %v439
    %476 = vmatprep.subr.mxu0 0.0
    %477 = vmatpush1.xpose.msra.mxu0 %v442
    %478 = vmatprep.subr.mxu0 0.0
    %479 = vmatpush1.xpose.msra.mxu0 %v445
    %480 = vmatprep.subr.mxu0 0.0
    %481 = vmatpush1.xpose.msra.mxu0 %v448
    %482 = vmatprep.subr.mxu0 0.0
    %483 = vmatpush1.xpose.msra.mxu0 0.0
    %484 = vmatprep.subr.mxu0 0.0
    %485 = vmatpush1.xpose.msra.mxu0 0.0
    %486 = vmatprep.subr.mxu0 0.0
    %487 = vmatpush1.xpose.msra.mxu0 0.0
    %488 = vmatprep.subr.mxu0 0.0
    %489 = vmatpush1.xpose.msra.mxu0 0.0
    %490 = vmatprep.subr.mxu0 0.0
    %491 = vmatpush1.xpose.msra.mxu0 0.0
    %492 = vmatprep.subr.mxu0 0.0
    %493 = vmatpush1.xpose.msra.mxu0 0.0
    %494 = vmatprep.subr.mxu0 0.0
    %495 = vmatpush1.xpose.msra.mxu0 0.0
    %496 = vmatprep.subr.mxu0 0.0
    %497 = vmatpush1.xpose.msra.mxu0 0.0
    %498 = vmatprep.subr.mxu0 0.0
    %499 = vmatpush1.xpose.msra.mxu0 0.0
    %500 = vmatprep.subr.mxu0 0.0
    %501 = vmatpush1.xpose.msra.mxu0 0.0
    %502 = vmatprep.subr.mxu0 0.0
    %503 = vmatpush1.xpose.msra.mxu0 0.0
    %504 = vmatprep.subr.mxu0 0.0
    %505 = vmatpush1.xpose.msra.mxu0 0.0
    %506 = vmatprep.subr.mxu0 0.0
    %507 = vmatpush1.xpose.msra.mxu0 0.0
    %508 = vmatprep.subr.mxu0 0.0
    %509 = vmatpush1.xpose.msra.mxu0 0.0
    %510 = vmatprep.subr.mxu0 0.0
    %511 = vmatpush1.xpose.msra.mxu0 0.0
    %512 = vmatprep.subr.mxu0 0.0
    %513 = vmatpush1.xpose.msra.mxu0 0.0
    %514 = vmatprep.mubr.f32.mxu0 0.0
    %515 = vmatmul.mubr.f32.gmra.mrb[0].mxu0 %v400
    %v516 = vpop.f32.mrb[0].mxu0
    %v517 = vadd.f32 0.0, %v516
    %v518 = vpop.f32.mrb[0].mxu0
    %519 = vdwg.mxu0
    %520 = vst [vmem:[#allocation5] sm:$0xff] %v517
    // Predicated region
    $region22: #{tpu_custom_call.1} parent=1 // pred_check
      _
    $region23: #{tpu_custom_call.1} parent=1 // pred_check_branch
      %522 = sbr.rel (0) target = $region25
    $region24: #{tpu_custom_call.1} parent=1 // pred_region
      %s524 = ssub.s32 128, 128
      %525 = vsyncadd [#allocation6], %s524
      %s527 = sshll.u32 [#allocation5], 4
      %s528 = int_to_ptr.vmem [resolvable:$true] %s527
      %530 = dma.vmem_to_hbm [thread:$0]  %s528, 128, %s6, [#allocation6]
    $region25: #{tpu_custom_call.1} parent=1 // pred_fallthru
      _
    // Predicated region
    $region26: #{tpu_custom_call.1} parent=1 // pred_check
      _
    $region27: #{tpu_custom_call.1} parent=1 // pred_check_branch
      %532 = sbr.rel (0) target = $region29
    $region28: #{tpu_custom_call.1} parent=1 // pred_region
      %533 = dma.done [#allocation6], 128
    $region29: #{tpu_custom_call.1} parent=1 // pred_fallthru
      _
    %534 = vsyncpa [#allocation6], 1

</llo_original>
